<compile_context>
chip_gen: v5e
topology: v5e:2x2
jax: 0.10.0
libtpu: 0.0.40
codegen_flags: <defaults>
</compile_context>

<pallas_src>
import math

import jax
import jax.numpy as jnp
from jax import lax
from jax.experimental import pallas as pl
from jax.experimental.pallas import tpu as pltpu


def _choose_head_group(H, D):
    """Heads per grid step: make the group lane width G*D a multiple of 128
    (lane-dense v loads / output stores); else fall back to all heads
    (G*D == C, the full last dim, which is always a legal block)."""
    g = max(1, 128 // max(D, 1))
    if H % g == 0 and (g * D) % 128 == 0:
        return g
    return H


def _choose_tile(n, target):
    """Largest multiple of 8 that divides n and is <= target (or n itself)."""
    if n <= target:
        return n
    t = (target // 8) * 8
    while t >= 8:
        if n % t == 0:
            return t
        t -= 8
    return n


def fpsa_forward(z_k, x, qkv_weight, qkv_bias, temperature, num_heads,
                 *, block_q=256, block_kv=256):
    """Pallas TPU forward of FixedPointSelfAttentionStepFlash.

    z_k, x      : (B, N, C)
    qkv_weight  : (3C, C)  (torch Linear layout: out_features x in_features)
    qkv_bias    : (3C,) or None
    temperature : (H,)
    """
    B, N, C = z_k.shape
    H = num_heads
    D = C // H

    G = _choose_head_group(H, D)     # heads per grid step
    Hg = H // G                      # number of head groups
    GD = G * D                       # lane width of one group (>=128 or == C)

    tq = _choose_tile(N, block_q)
    tk = _choose_tile(N, block_kv)
    nq = N // tq
    nk = N // tk

    # MXU input dtype: bf16 inputs stay bf16 (full-rate MXU), f32 stays f32.
    cdt = jnp.bfloat16 if z_k.dtype == jnp.bfloat16 else jnp.float32

    # ---- parameter plumbing (tiny, done once per call) ---------------------
    # Fold the per-head temperature scale AND the SDPA 1/sqrt(D) scale into the
    # q projection:  (q*s) @ (k*s)^T / sqrt(D)  ==  (q * s^2/sqrt(D)) @ k^T
    q_scale = 1.0 / (temperature.astype(jnp.float32) * math.sqrt(D))        # (H,)
    w_q = qkv_weight[:C].astype(jnp.float32).reshape(H, D, C) * q_scale[:, None, None]
    w_k = qkv_weight[C:2 * C].astype(jnp.float32).reshape(H, D, C)
    w_q = w_q.reshape(Hg, GD, C).astype(cdt)
    w_k = w_k.reshape(Hg, GD, C).astype(cdt)

    # qkv bias is zeros in the module init — skip it statically when possible.
    if qkv_bias is None:
        use_bias = False
    else:
        try:
            use_bias = bool(jnp.any(qkv_bias != 0))
        except Exception:            # traced bias (e.g. under jit): keep it
            use_bias = True
    if use_bias:
        b_q = (qkv_bias[:C].astype(jnp.float32).reshape(H, D)
               * q_scale[:, None]).reshape(Hg, 1, GD)
        b_k = qkv_bias[C:2 * C].astype(jnp.float32).reshape(Hg, 1, GD)

    dn = (((1,), (1,)), ((), ()))     # contract last dims: A @ B.T

    def kernel(zq_ref, zk_ref, xv_ref, wq_ref, wk_ref, *rest):
        if use_bias:
            bq_ref, bk_ref, o_ref, q_sc, k_sc, m_sc, l_sc, acc_sc = rest
        else:
            o_ref, q_sc, k_sc, m_sc, l_sc, acc_sc = rest

        qi = pl.program_id(2)
        ki = pl.program_id(3)

        # K projection: once per (head-group, batch) during the qi == 0 sweep,
        # cached in VMEM and reused by every later q tile (no recompute).
        @pl.when(qi == 0)
        def _():
            kt = lax.dot_general(zk_ref[...], wk_ref[...], dn,
                                 preferred_element_type=jnp.float32)
            if use_bias:
                kt = kt + bk_ref[...]
            k_sc[pl.ds(pl.multiple_of(ki * tk, tk), tk), :] = kt.astype(k_sc.dtype)

        # Q projection + online-softmax state init: once per (group, batch, q tile).
        @pl.when(ki == 0)
        def _():
            qt = lax.dot_general(zq_ref[...], wq_ref[...], dn,
                                 preferred_element_type=jnp.float32)
            if use_bias:
                qt = qt + bq_ref[...]
            q_sc[...] = qt.astype(q_sc.dtype)
            m_sc[...] = jnp.full_like(m_sc, -jnp.inf)
            l_sc[...] = jnp.zeros_like(l_sc)
            acc_sc[...] = jnp.zeros_like(acc_sc)

        q = q_sc[...]                                            # (tq, GD)
        k = k_sc[pl.ds(pl.multiple_of(ki * tk, tk), tk), :]      # (tk, GD)
        v = xv_ref[...]                                          # (tk, GD)

        # Online-softmax flash update, one head (D lanes) at a time (G small, static).
        for j in range(G):
            lo = j * D
            qj = q[:, lo:lo + D]
            kj = k[:, lo:lo + D]
            vj = v[:, lo:lo + D]
            s = lax.dot_general(qj, kj, dn,
                                preferred_element_type=jnp.float32)   # (tq, tk)
            m_prev = m_sc[:, j:j + 1]
            m_new = jnp.maximum(m_prev, jnp.max(s, axis=-1, keepdims=True))
            alpha = jnp.exp(m_prev - m_new)
            p = jnp.exp(s - m_new)
            l_sc[:, j:j + 1] = alpha * l_sc[:, j:j + 1] + jnp.sum(
                p, axis=-1, keepdims=True)
            acc_sc[:, lo:lo + D] = alpha * acc_sc[:, lo:lo + D] + jnp.dot(
                p.astype(v.dtype), vj, preferred_element_type=jnp.float32)
            m_sc[:, j:j + 1] = m_new

        # Finalize: fold 1/l into the (tq, D) outputs (EUP approx reciprocal),
        # tanh, one lane-dense (tq, G*D) store straight into the (B, N, C) output.
        @pl.when(ki == pl.num_programs(3) - 1)
        def _():
            outs = []
            for j in range(G):
                lo = j * D
                inv_l = pl.reciprocal(l_sc[:, j:j + 1], approx=True)
                outs.append(acc_sc[:, lo:lo + D] * inv_l)
            o = outs[0] if G == 1 else jnp.concatenate(outs, axis=-1)
            o_ref[...] = jnp.tanh(o).astype(o_ref.dtype)

    # Grid: head-group outermost (weights stay VMEM-resident across the batch),
    # KV tiles innermost (the online-softmax reduction axis).
    grid = (Hg, B, nq, nk)

    in_specs = [
        # z_k tile for the q projection: varies with (b, qi), resident across ki.
        pl.BlockSpec((None, tq, C), lambda g, b, qi, ki: (b, qi, 0)),
        # z_k tile for the k projection: only needed while qi == 0; afterwards
        # the index map is pinned to block 0 so Pallas elides the re-DMA.
        pl.BlockSpec((None, tk, C),
                     lambda g, b, qi, ki: (b, jnp.where(qi == 0, ki, 0), 0)),
        # v read directly from x in (B, N, C) layout (no wrapper transpose).
        pl.BlockSpec((None, tk, GD), lambda g, b, qi, ki: (b, ki, g)),
        # Per-group projection weights (temperature/sqrt(D) pre-folded into w_q).
        pl.BlockSpec((None, GD, C), lambda g, b, qi, ki: (g, 0, 0)),
        pl.BlockSpec((None, GD, C), lambda g, b, qi, ki: (g, 0, 0)),
    ]
    operands = [z_k, z_k, x, w_q, w_k]
    if use_bias:
        in_specs += [
            pl.BlockSpec((None, 1, GD), lambda g, b, qi, ki: (g, 0, 0)),
            pl.BlockSpec((None, 1, GD), lambda g, b, qi, ki: (g, 0, 0)),
        ]
        operands += [b_q, b_k]

    out = pl.pallas_call(
        kernel,
        out_shape=jax.ShapeDtypeStruct((B, N, C), z_k.dtype),
        grid=grid,
        in_specs=in_specs,
        # Output written directly in (B, N, C) layout, lane-dense block.
        out_specs=pl.BlockSpec((None, tq, GD), lambda g, b, qi, ki: (b, qi, g)),
        scratch_shapes=[
            pltpu.VMEM((tq, GD), cdt),           # cached Q tile
            pltpu.VMEM((N, GD), cdt),            # K cache for the full sequence
            pltpu.VMEM((tq, G), jnp.float32),    # running max (per head)
            pltpu.VMEM((tq, G), jnp.float32),    # running sum (per head)
            pltpu.VMEM((tq, GD), jnp.float32),   # output accumulator
        ],
        compiler_params=pltpu.CompilerParams(
            dimension_semantics=("parallel", "parallel", "arbitrary", "arbitrary"),
            vmem_limit_bytes=64 * 1024 * 1024,
        ),
    )(*operands)

    return out


def ref_forward(z_k, x, qkv_weight, qkv_bias, temperature, num_heads):
    """Pure-JAX reference mirroring the PyTorch module exactly."""
    B, N, C = z_k.shape
    H = num_heads
    D = C // H
    qkv = z_k @ qkv_weight.T + qkv_bias                        # (B, N, 3C)
    qkv = qkv.reshape(B, N, 3, H, D).transpose(2, 0, 3, 1, 4)  # (3, B, H, N, D)
    q, k = qkv[0], qkv[1]
    v = x.reshape(B, N, H, D).transpose(0, 2, 1, 3)
    scale = (1.0 / jnp.sqrt(temperature)).reshape(1, H, 1, 1)
    q = q * scale
    k = k * scale
    logits = jnp.einsum('bhnd,bhmd->bhnm', q, k) / math.sqrt(D)
    attn = jax.nn.softmax(logits, axis=-1)
    out = jnp.einsum('bhnm,bhmd->bhnd', attn, v)
    out = out.transpose(0, 2, 1, 3).reshape(B, N, C)
    return jnp.tanh(out)


if __name__ == "__main__":
    B, N, C, H = 2, 8, 32, 2
    D = C // H

    key = jax.random.PRNGKey(0)
    kz, kx, kw = jax.random.split(key, 3)
    z_k = jax.random.normal(kz, (B, N, C), jnp.float32)
    x = jax.random.normal(kx, (B, N, C), jnp.float32)

    # Deterministic parameter init (mirrors __init__):
    #   qkv.weight: orthogonal (3C, C) via QR with sign correction; qkv.bias: zeros
    #   temperature[h] = 1 + (h + 1) * 0.1
    A = jax.random.normal(kw, (3 * C, C), jnp.float32)
    Q, R = jnp.linalg.qr(A)
    qkv_weight = Q * jnp.sign(jnp.diag(R))[None, :]
    qkv_bias = jnp.zeros((3 * C,), jnp.float32)
    temperature = jnp.array([1.0 + (h + 1) * 0.1 for h in range(H)], jnp.float32)

    out = fpsa_forward(z_k, x, qkv_weight, qkv_bias, temperature, H)
    out = jax.block_until_ready(out)

    ref = ref_forward(z_k, x, qkv_weight, qkv_bias, temperature, H)
    assert out.shape == (B, N, C)
    # Tolerance relaxed vs. v1 because softmax normalization uses the EUP
    # approx reciprocal (error at the ~1e-3 level, per the review note).
    assert jnp.allclose(out, ref, atol=5e-3, rtol=5e-3), "mismatch vs. JAX reference"

    print("KERNEL_OK")
</pallas_src>

<mosaic_0001>
module attributes {stable_mosaic.version = 11 : i64} {
  func.func @kernel(%arg0: i32, %arg1: i32, %arg2: i32, %arg3: i32, %arg4: memref<1x8x32xf32, #tpu.memory_space<vmem>>, %arg5: memref<1x8x32xf32, #tpu.memory_space<vmem>>, %arg6: memref<1x8x32xf32, #tpu.memory_space<vmem>>, %arg7: memref<1x32x32xf32, #tpu.memory_space<vmem>>, %arg8: memref<1x32x32xf32, #tpu.memory_space<vmem>>, %arg9: memref<1x8x32xf32, #tpu.memory_space<vmem>>, %arg10: memref<8x32xf32, #tpu.memory_space<vmem>>, %arg11: memref<8x32xf32, #tpu.memory_space<vmem>>, %arg12: memref<8x2xf32, #tpu.memory_space<vmem>>, %arg13: memref<8x2xf32, #tpu.memory_space<vmem>>, %arg14: memref<8x32xf32, #tpu.memory_space<vmem>>) attributes {dimension_semantics = [#tpu.dimension_semantics<parallel>, #tpu.dimension_semantics<parallel>, #tpu.dimension_semantics<arbitrary>, #tpu.dimension_semantics<arbitrary>], iteration_bounds = array<i64: 1, 2, 1, 1>, scalar_prefetch = 0 : i64, scratch_operands = 5 : i64, tpu.core_type = #tpu.core_type<tc>, window_params = [{transform_indices = @transform_0, window_bounds = array<i64: 1, 8, 32>}, {transform_indices = @transform_1, window_bounds = array<i64: 1, 8, 32>}, {transform_indices = @transform_2, window_bounds = array<i64: 1, 8, 32>}, {transform_indices = @transform_3, window_bounds = array<i64: 1, 32, 32>}, {transform_indices = @transform_4, window_bounds = array<i64: 1, 32, 32>}, {transform_indices = @transform_5, window_bounds = array<i64: 1, 8, 32>}]} {
    %c0_i32 = arith.constant 0 : i32
    %0 = arith.cmpi eq, %arg2, %c0_i32 : i32
    %1 = arith.extui %0 : i1 to i32
    %c0_i32_0 = arith.constant 0 : i32
    %2 = arith.cmpi ne, %1, %c0_i32_0 : i32
    scf.if %2 {
      %c0_39 = arith.constant 0 : index
      %c0_40 = arith.constant 0 : index
      %c0_41 = arith.constant 0 : index
      %68 = vector.load %arg5[%c0_39, %c0_40, %c0_41] : memref<1x8x32xf32, #tpu.memory_space<vmem>>, vector<1x8x32xf32>
      %69 = vector.shape_cast %68 : vector<1x8x32xf32> to vector<8x32xf32>
      %c0_42 = arith.constant 0 : index
      %c0_43 = arith.constant 0 : index
      %c0_44 = arith.constant 0 : index
      %70 = vector.load %arg8[%c0_42, %c0_43, %c0_44] : memref<1x32x32xf32, #tpu.memory_space<vmem>>, vector<1x32x32xf32>
      %71 = vector.shape_cast %70 : vector<1x32x32xf32> to vector<32x32xf32>
      %cst_45 = arith.constant dense<0.000000e+00> : vector<8x32xf32>
      %72 = tpu.matmul %69, %71, %cst_45 {dimension_numbers = #tpu.dot_dimension_numbers<[1], [1], [0], [0], [0, 0, 1, 0], [], []>} : vector<8x32xf32>, vector<32x32xf32>, vector<8x32xf32> -> vector<8x32xf32>
      %c8_i32_46 = arith.constant 8 : i32
      %73 = arith.muli %arg3, %c8_i32_46 : i32
      %74 = tpu.assume_multiple %73, 8 : i32
      %75 = arith.index_cast %74 : i32 to index
      %c0_47 = arith.constant 0 : index
      %76 = vector.load %arg11[%75, %c0_47] : memref<8x32xf32, #tpu.memory_space<vmem>>, vector<8x32xf32>
      tpu.vector_store %arg11[%75, %c0_47], %72 {strides = array<i32>} : memref<8x32xf32, #tpu.memory_space<vmem>>, vector<8x32xf32>,
    } else {
    }
    %c0_i32_1 = arith.constant 0 : i32
    %3 = arith.cmpi eq, %arg3, %c0_i32_1 : i32
    %4 = arith.extui %3 : i1 to i32
    %c0_i32_2 = arith.constant 0 : i32
    %5 = arith.cmpi ne, %4, %c0_i32_2 : i32
    scf.if %5 {
      %c0_39 = arith.constant 0 : index
      %c0_40 = arith.constant 0 : index
      %c0_41 = arith.constant 0 : index
      %68 = vector.load %arg4[%c0_39, %c0_40, %c0_41] : memref<1x8x32xf32, #tpu.memory_space<vmem>>, vector<1x8x32xf32>
      %69 = vector.shape_cast %68 : vector<1x8x32xf32> to vector<8x32xf32>
      %c0_42 = arith.constant 0 : index
      %c0_43 = arith.constant 0 : index
      %c0_44 = arith.constant 0 : index
      %70 = vector.load %arg7[%c0_42, %c0_43, %c0_44] : memref<1x32x32xf32, #tpu.memory_space<vmem>>, vector<1x32x32xf32>
      %71 = vector.shape_cast %70 : vector<1x32x32xf32> to vector<32x32xf32>
      %cst_45 = arith.constant dense<0.000000e+00> : vector<8x32xf32>
      %72 = tpu.matmul %69, %71, %cst_45 {dimension_numbers = #tpu.dot_dimension_numbers<[1], [1], [0], [0], [0, 0, 1, 0], [], []>} : vector<8x32xf32>, vector<32x32xf32>, vector<8x32xf32> -> vector<8x32xf32>
      %c0_46 = arith.constant 0 : index
      %c0_47 = arith.constant 0 : index
      %73 = vector.load %arg10[%c0_46, %c0_47] : memref<8x32xf32, #tpu.memory_space<vmem>>, vector<8x32xf32>
      tpu.vector_store %arg10[%c0_46, %c0_47], %72 {strides = array<i32>} : memref<8x32xf32, #tpu.memory_space<vmem>>, vector<8x32xf32>,
      %cst_48 = arith.constant 0xFF800000 : f32
      %74 = vector.broadcast %cst_48 : f32 to vector<8x2xf32>
      %c0_49 = arith.constant 0 : index
      %c0_50 = arith.constant 0 : index
      %75 = vector.load %arg12[%c0_49, %c0_50] : memref<8x2xf32, #tpu.memory_space<vmem>>, vector<8x2xf32>
      tpu.vector_store %arg12[%c0_49, %c0_50], %74 {strides = array<i32>} : memref<8x2xf32, #tpu.memory_space<vmem>>, vector<8x2xf32>,
      %cst_51 = arith.constant 0.000000e+00 : f32
      %76 = vector.broadcast %cst_51 : f32 to vector<8x2xf32>
      %c0_52 = arith.constant 0 : index
      %c0_53 = arith.constant 0 : index
      %77 = vector.load %arg13[%c0_52, %c0_53] : memref<8x2xf32, #tpu.memory_space<vmem>>, vector<8x2xf32>
      tpu.vector_store %arg13[%c0_52, %c0_53], %76 {strides = array<i32>} : memref<8x2xf32, #tpu.memory_space<vmem>>, vector<8x2xf32>,
      %cst_54 = arith.constant 0.000000e+00 : f32
      %78 = vector.broadcast %cst_54 : f32 to vector<8x32xf32>
      %c0_55 = arith.constant 0 : index
      %c0_56 = arith.constant 0 : index
      %79 = vector.load %arg14[%c0_55, %c0_56] : memref<8x32xf32, #tpu.memory_space<vmem>>, vector<8x32xf32>
      tpu.vector_store %arg14[%c0_55, %c0_56], %78 {strides = array<i32>} : memref<8x32xf32, #tpu.memory_space<vmem>>, vector<8x32xf32>,
    } else {
    }
    %c0 = arith.constant 0 : index
    %c0_3 = arith.constant 0 : index
    %6 = vector.load %arg10[%c0, %c0_3] : memref<8x32xf32, #tpu.memory_space<vmem>>, vector<8x32xf32>
    %c8_i32 = arith.constant 8 : i32
    %7 = arith.muli %arg3, %c8_i32 : i32
    %8 = tpu.assume_multiple %7, 8 : i32
    %9 = arith.index_cast %8 : i32 to index
    %c0_4 = arith.constant 0 : index
    %10 = vector.load %arg11[%9, %c0_4] : memref<8x32xf32, #tpu.memory_space<vmem>>, vector<8x32xf32>
    %c0_5 = arith.constant 0 : index
    %c0_6 = arith.constant 0 : index
    %c0_7 = arith.constant 0 : index
    %11 = vector.load %arg6[%c0_5, %c0_6, %c0_7] : memref<1x8x32xf32, #tpu.memory_space<vmem>>, vector<1x8x32xf32>
    %12 = vector.shape_cast %11 : vector<1x8x32xf32> to vector<8x32xf32>
    %13 = vector.extract_strided_slice %6 {offsets = [0, 0], sizes = [8, 16], strides = [1, 1]} : vector<8x32xf32> to vector<8x16xf32>
    %14 = vector.extract_strided_slice %10 {offsets = [0, 0], sizes = [8, 16], strides = [1, 1]} : vector<8x32xf32> to vector<8x16xf32>
    %15 = vector.extract_strided_slice %12 {offsets = [0, 0], sizes = [8, 16], strides = [1, 1]} : vector<8x32xf32> to vector<8x16xf32>
    %cst = arith.constant dense<0.000000e+00> : vector<8x8xf32>
    %16 = tpu.matmul %13, %14, %cst {dimension_numbers = #tpu.dot_dimension_numbers<[1], [1], [0], [0], [0, 0, 1, 0], [], []>} : vector<8x16xf32>, vector<8x16xf32>, vector<8x8xf32> -> vector<8x8xf32>
    %c0_8 = arith.constant 0 : index
    %c0_9 = arith.constant 0 : index
    %17 = vector.load %arg12[%c0_8, %c0_9] : memref<8x2xf32, #tpu.memory_space<vmem>>, vector<8x1xf32>
    %cst_10 = arith.constant dense<0xFF800000> : vector<8xf32>
    %18 = vector.multi_reduction <maximumf>, %16, %cst_10 [1] : vector<8x8xf32> to vector<8xf32>
    %19 = vector.shape_cast %18 : vector<8xf32> to vector<8x1xf32>
    %20 = arith.maximumf %17, %19 : vector<8x1xf32>
    %21 = arith.subf %17, %20 : vector<8x1xf32>
    %22 = math.exp %21 : vector<8x1xf32>
    %23 = vector.broadcast %20 : vector<8x1xf32> to vector<8x8xf32>
    %24 = arith.subf %16, %23 : vector<8x8xf32>
    %25 = math.exp %24 : vector<8x8xf32>
    %c0_11 = arith.constant 0 : index
    %c0_12 = arith.constant 0 : index
    %26 = vector.load %arg13[%c0_11, %c0_12] : memref<8x2xf32, #tpu.memory_space<vmem>>, vector<8x1xf32>
    %27 = arith.mulf %22, %26 : vector<8x1xf32>
    %cst_13 = arith.constant dense<0.000000e+00> : vector<8xf32>
    %28 = vector.multi_reduction <add>, %25, %cst_13 [1] : vector<8x8xf32> to vector<8xf32>
    %29 = vector.shape_cast %28 : vector<8xf32> to vector<8x1xf32>
    %30 = arith.addf %27, %29 : vector<8x1xf32>
    %c0_14 = arith.constant 0 : index
    %c0_15 = arith.constant 0 : index
    %31 = vector.load %arg13[%c0_14, %c0_15] : memref<8x2xf32, #tpu.memory_space<vmem>>, vector<8x1xf32>
    tpu.vector_store %arg13[%c0_14, %c0_15], %30 {strides = array<i32>} : memref<8x2xf32, #tpu.memory_space<vmem>>, vector<8x1xf32>,
    %c0_16 = arith.constant 0 : index
    %c0_17 = arith.constant 0 : index
    %32 = vector.load %arg14[%c0_16, %c0_17] : memref<8x32xf32, #tpu.memory_space<vmem>>, vector<8x16xf32>
    %33 = vector.broadcast %22 : vector<8x1xf32> to vector<8x16xf32>
    %34 = arith.mulf %33, %32 : vector<8x16xf32>
    %cst_18 = arith.constant dense<0.000000e+00> : vector<8x16xf32>
    %35 = tpu.matmul %25, %15, %cst_18 {dimension_numbers = #tpu.dot_dimension_numbers<[1], [0], [0], [1], [0, 0, 1, 1], [], []>} : vector<8x8xf32>, vector<8x16xf32>, vector<8x16xf32> -> vector<8x16xf32>
    %36 = arith.addf %34, %35 : vector<8x16xf32>
    %c0_19 = arith.constant 0 : index
    %c0_20 = arith.constant 0 : index
    %37 = vector.load %arg14[%c0_19, %c0_20] : memref<8x32xf32, #tpu.memory_space<vmem>>, vector<8x16xf32>
    tpu.vector_store %arg14[%c0_19, %c0_20], %36 {strides = array<i32>} : memref<8x32xf32, #tpu.memory_space<vmem>>, vector<8x16xf32>,
    %c0_21 = arith.constant 0 : index
    %c0_22 = arith.constant 0 : index
    %38 = vector.load %arg12[%c0_21, %c0_22] : memref<8x2xf32, #tpu.memory_space<vmem>>, vector<8x1xf32>
    tpu.vector_store %arg12[%c0_21, %c0_22], %20 {strides = array<i32>} : memref<8x2xf32, #tpu.memory_space<vmem>>, vector<8x1xf32>,
    %39 = vector.extract_strided_slice %6 {offsets = [0, 16], sizes = [8, 16], strides = [1, 1]} : vector<8x32xf32> to vector<8x16xf32>
    %40 = vector.extract_strided_slice %10 {offsets = [0, 16], sizes = [8, 16], strides = [1, 1]} : vector<8x32xf32> to vector<8x16xf32>
    %41 = vector.extract_strided_slice %12 {offsets = [0, 16], sizes = [8, 16], strides = [1, 1]} : vector<8x32xf32> to vector<8x16xf32>
    %cst_23 = arith.constant dense<0.000000e+00> : vector<8x8xf32>
    %42 = tpu.matmul %39, %40, %cst_23 {dimension_numbers = #tpu.dot_dimension_numbers<[1], [1], [0], [0], [0, 0, 1, 0], [], []>} : vector<8x16xf32>, vector<8x16xf32>, vector<8x8xf32> -> vector<8x8xf32>
    %c0_24 = arith.constant 0 : index
    %c1 = arith.constant 1 : index
    %43 = vector.load %arg12[%c0_24, %c1] : memref<8x2xf32, #tpu.memory_space<vmem>>, vector<8x1xf32>
    %cst_25 = arith.constant dense<0xFF800000> : vector<8xf32>
    %44 = vector.multi_reduction <maximumf>, %42, %cst_25 [1] : vector<8x8xf32> to vector<8xf32>
    %45 = vector.shape_cast %44 : vector<8xf32> to vector<8x1xf32>
    %46 = arith.maximumf %43, %45 : vector<8x1xf32>
    %47 = arith.subf %43, %46 : vector<8x1xf32>
    %48 = math.exp %47 : vector<8x1xf32>
    %49 = vector.broadcast %46 : vector<8x1xf32> to vector<8x8xf32>
    %50 = arith.subf %42, %49 : vector<8x8xf32>
    %51 = math.exp %50 : vector<8x8xf32>
    %c0_26 = arith.constant 0 : index
    %c1_27 = arith.constant 1 : index
    %52 = vector.load %arg13[%c0_26, %c1_27] : memref<8x2xf32, #tpu.memory_space<vmem>>, vector<8x1xf32>
    %53 = arith.mulf %48, %52 : vector<8x1xf32>
    %cst_28 = arith.constant dense<0.000000e+00> : vector<8xf32>
    %54 = vector.multi_reduction <add>, %51, %cst_28 [1] : vector<8x8xf32> to vector<8xf32>
    %55 = vector.shape_cast %54 : vector<8xf32> to vector<8x1xf32>
    %56 = arith.addf %53, %55 : vector<8x1xf32>
    %c0_29 = arith.constant 0 : index
    %c1_30 = arith.constant 1 : index
    %57 = vector.load %arg13[%c0_29, %c1_30] : memref<8x2xf32, #tpu.memory_space<vmem>>, vector<8x1xf32>
    tpu.vector_store %arg13[%c0_29, %c1_30], %56 {strides = array<i32>} : memref<8x2xf32, #tpu.memory_space<vmem>>, vector<8x1xf32>,
    %c0_31 = arith.constant 0 : index
    %c16 = arith.constant 16 : index
    %58 = vector.load %arg14[%c0_31, %c16] : memref<8x32xf32, #tpu.memory_space<vmem>>, vector<8x16xf32>
    %59 = vector.broadcast %48 : vector<8x1xf32> to vector<8x16xf32>
    %60 = arith.mulf %59, %58 : vector<8x16xf32>
    %cst_32 = arith.constant dense<0.000000e+00> : vector<8x16xf32>
    %61 = tpu.matmul %51, %41, %cst_32 {dimension_numbers = #tpu.dot_dimension_numbers<[1], [0], [0], [1], [0, 0, 1, 1], [], []>} : vector<8x8xf32>, vector<8x16xf32>, vector<8x16xf32> -> vector<8x16xf32>
    %62 = arith.addf %60, %61 : vector<8x16xf32>
    %c0_33 = arith.constant 0 : index
    %c16_34 = arith.constant 16 : index
    %63 = vector.load %arg14[%c0_33, %c16_34] : memref<8x32xf32, #tpu.memory_space<vmem>>, vector<8x16xf32>
    tpu.vector_store %arg14[%c0_33, %c16_34], %62 {strides = array<i32>} : memref<8x32xf32, #tpu.memory_space<vmem>>, vector<8x16xf32>,
    %c0_35 = arith.constant 0 : index
    %c1_36 = arith.constant 1 : index
    %64 = vector.load %arg12[%c0_35, %c1_36] : memref<8x2xf32, #tpu.memory_space<vmem>>, vector<8x1xf32>
    tpu.vector_store %arg12[%c0_35, %c1_36], %46 {strides = array<i32>} : memref<8x2xf32, #tpu.memory_space<vmem>>, vector<8x1xf32>,
    %c0_i32_37 = arith.constant 0 : i32
    %65 = arith.cmpi eq, %arg3, %c0_i32_37 : i32
    %66 = arith.extui %65 : i1 to i32
    %c0_i32_38 = arith.constant 0 : i32
    %67 = arith.cmpi ne, %66, %c0_i32_38 : i32
    scf.if %67 {
      %c0_39 = arith.constant 0 : index
      %c0_40 = arith.constant 0 : index
      %68 = vector.load %arg13[%c0_39, %c0_40] : memref<8x2xf32, #tpu.memory_space<vmem>>, vector<8x1xf32>
      %69 = tpu.reciprocal %68 {approx = true} : vector<8x1xf32> -> vector<8x1xf32>
      %c0_41 = arith.constant 0 : index
      %c0_42 = arith.constant 0 : index
      %70 = vector.load %arg14[%c0_41, %c0_42] : memref<8x32xf32, #tpu.memory_space<vmem>>, vector<8x16xf32>
      %71 = vector.broadcast %69 : vector<8x1xf32> to vector<8x16xf32>
      %72 = arith.mulf %70, %71 : vector<8x16xf32>
      %c0_43 = arith.constant 0 : index
      %c1_44 = arith.constant 1 : index
      %73 = vector.load %arg13[%c0_43, %c1_44] : memref<8x2xf32, #tpu.memory_space<vmem>>, vector<8x1xf32>
      %74 = tpu.reciprocal %73 {approx = true} : vector<8x1xf32> -> vector<8x1xf32>
      %c0_45 = arith.constant 0 : index
      %c16_46 = arith.constant 16 : index
      %75 = vector.load %arg14[%c0_45, %c16_46] : memref<8x32xf32, #tpu.memory_space<vmem>>, vector<8x16xf32>
      %76 = vector.broadcast %74 : vector<8x1xf32> to vector<8x16xf32>
      %77 = arith.mulf %75, %76 : vector<8x16xf32>
      %78 = tpu.concatenate %72, %77 in 1 : vector<8x16xf32>, vector<8x16xf32> -> vector<8x32xf32>
      %79 = math.tanh %78 : vector<8x32xf32>
      %c0_47 = arith.constant 0 : index
      %c0_48 = arith.constant 0 : index
      %c0_49 = arith.constant 0 : index
      %80 = vector.load %arg9[%c0_47, %c0_48, %c0_49] : memref<1x8x32xf32, #tpu.memory_space<vmem>>, vector<1x8x32xf32>
      %81 = vector.shape_cast %80 : vector<1x8x32xf32> to vector<8x32xf32>
      %82 = vector.shape_cast %79 : vector<8x32xf32> to vector<1x8x32xf32>
      tpu.vector_store %arg9[%c0_47, %c0_48, %c0_49], %82 {strides = array<i32>} : memref<1x8x32xf32, #tpu.memory_space<vmem>>, vector<1x8x32xf32>,
    } else {
    }
    return
  }
  func.func @transform_0(%arg0: i32, %arg1: i32, %arg2: i32, %arg3: i32) -> (i32, i32, i32) {
    %c0_i32 = arith.constant 0 : i32
    %c0_i32_0 = arith.constant 0 : i32
    return %arg1, %arg2, %c0_i32 : i32, i32, i32
  }
  func.func @transform_1(%arg0: i32, %arg1: i32, %arg2: i32, %arg3: i32) -> (i32, i32, i32) {
    %c0_i32 = arith.constant 0 : i32
    %0 = arith.cmpi eq, %arg2, %c0_i32 : i32
    %c0_i32_0 = arith.constant 0 : i32
    %1 = arith.select %0, %arg3, %c0_i32_0 : i32
    %c0_i32_1 = arith.constant 0 : i32
    %c0_i32_2 = arith.constant 0 : i32
    return %arg1, %1, %c0_i32_1 : i32, i32, i32
  }
  func.func @transform_2(%arg0: i32, %arg1: i32, %arg2: i32, %arg3: i32) -> (i32, i32, i32) {
    %c0_i32 = arith.constant 0 : i32
    return %arg1, %arg3, %arg0 : i32, i32, i32
  }
  func.func @transform_3(%arg0: i32, %arg1: i32, %arg2: i32, %arg3: i32) -> (i32, i32, i32) {
    %c0_i32 = arith.constant 0 : i32
    %c0_i32_0 = arith.constant 0 : i32
    %c0_i32_1 = arith.constant 0 : i32
    return %arg0, %c0_i32, %c0_i32_0 : i32, i32, i32
  }
  func.func @transform_4(%arg0: i32, %arg1: i32, %arg2: i32, %arg3: i32) -> (i32, i32, i32) {
    %c0_i32 = arith.constant 0 : i32
    %c0_i32_0 = arith.constant 0 : i32
    %c0_i32_1 = arith.constant 0 : i32
    return %arg0, %c0_i32, %c0_i32_0 : i32, i32, i32
  }
  func.func @transform_5(%arg0: i32, %arg1: i32, %arg2: i32, %arg3: i32) -> (i32, i32, i32) {
    %c0_i32 = arith.constant 0 : i32
    return %arg1, %arg2, %arg0 : i32, i32, i32
  }
}

</mosaic_0001>

<llo_original>
// kernel: tpu_custom_call.1
$region0: #{tpu_custom_call.1}
  #allocation0 [shape = 'u32[]', space=smem, size = 0x4, offset = 0x4, fixed_abs, tag = 'smem constant byte address 0x4 - core index']
  #allocation1 [shape = 'u32[72,128]{1,0:T(1,128)}', space=vmem, size = 0x9000, scoped, tag = 'internal scratch']
  #allocation2 [shape = 'f32[8,32]{1,0:T(8,128)}', space=vmem, size = 0x1000, scoped, tag = 'scratch operand']
  #allocation3 [shape = 'f32[8,32]{1,0:T(8,128)}', space=vmem, size = 0x1000, scoped, tag = 'scratch operand']
  #allocation4 [shape = 'f32[8,2]{1,0:T(8,128)}', space=vmem, size = 0x1000, scoped, tag = 'scratch operand']
  #allocation5 [shape = 'f32[8,2]{1,0:T(8,128)}', space=vmem, size = 0x1000, scoped, tag = 'scratch operand']
  #allocation6 [shape = 'f32[8,32]{1,0:T(8,128)}', space=vmem, size = 0x1000, scoped, tag = 'scratch operand']
  %s0 = inlined_call_operand.hbm [shape: f32[2,8,32], index: 0, kind: input, shape index: {}]
  %s1 = inlined_call_operand.hbm [shape: f32[2,8,32], index: 1, kind: input, shape index: {}]
  %s2 = inlined_call_operand.hbm [shape: f32[2,8,32], index: 2, kind: input, shape index: {}]
  %s3 = inlined_call_operand.hbm [shape: f32[1,32,32], index: 3, kind: input, shape index: {}]
  %s4 = inlined_call_operand.hbm [shape: f32[1,32,32], index: 4, kind: input, shape index: {}]
  %s5 = inlined_call_operand.hbm [shape: f32[2,8,32], index: 5, kind: output, shape index: {}]
  %s6 = sld [smem:[#allocation0]]
  $region85: #{tpu_custom_call.1} parent=0
    _
  %s8 = ssub.s32 1, %s6
  %s9 = scalar_select 0, %s8, %s6
  $region1: #{tpu_custom_call.1} parent=0
    #allocation7 [shape = 'u8[8192]{0}', space=vmem, size = 0x2000, scoped, tag = 'input window, operand 0']
    #allocation8 [shape = 's32[2]{0}', space=sflag, size = 0x8, scoped, tag = 'scoped memory for tpu_custom_call.1']
    #allocation9 [shape = 's32[2]{0}', space=sflag, size = 0x8, scoped, tag = 'scoped memory for tpu_custom_call.1']
    #allocation10 [shape = 'u8[8192]{0}', space=vmem, size = 0x2000, scoped, tag = 'input window, operand 1']
    #allocation11 [shape = 's32[2]{0}', space=sflag, size = 0x8, scoped, tag = 'scoped memory for tpu_custom_call.1']
    #allocation12 [shape = 'u8[8192]{0}', space=vmem, size = 0x2000, scoped, tag = 'input window, operand 2']
    #allocation13 [shape = 'u8[16384]{0}', space=vmem, size = 0x4000, scoped, tag = 'input window, operand 3, single buffered']
    #allocation14 [shape = 's32[1]{0}', space=sflag, size = 0x4, scoped, tag = 'scoped memory for tpu_custom_call.1']
    #allocation15 [shape = 'u8[16384]{0}', space=vmem, size = 0x4000, scoped, tag = 'input window, operand 4, single buffered']
    #allocation16 [shape = 'u8[8192]{0}', space=vmem, size = 0x2000, scoped, tag = 'output window, operand 0']
    %10 = vsyncpa [#allocation8], 0
    %s11 = scalar_lea.sflag [#allocation8], 1
    %12 = vsyncpa %s11, 0
    %13 = vsyncpa [#allocation11], 0
    %s14 = scalar_lea.sflag [#allocation11], 1
    %15 = vsyncpa %s14, 0
    %16 = vsyncpa [#allocation14], 0
    %17 = vsyncpa [#allocation9], 0
    %s18 = scalar_lea.sflag [#allocation9], 1
    %19 = vsyncpa %s18, 0
    loop: start=0, step=1, limit=4
    $region2: #{tpu_custom_call.1} parent=1 // loop_pre_header
      _
    $region3: #{tpu_custom_call.1} parent=1 // loop_header
      %s21 = sphi 0, %s25
      %p22 = scmp.ge.s32.totalorder %s21, 4
      %s28 = sphi 0, %s54
      %s29 = sphi 0, %s50
      %s30 = sphi 0, %s46
      %s31 = sphi 0, %s42
      %s32 = sphi 0, %s28
      %s33 = sphi 0, %s29
      %s34 = sphi 0, %s30
      %s35 = sphi 0, %s31
      %s36 = sphi 0, %s32
      %s37 = sphi 0, %s33
      %s38 = sphi 0, %s34
      %s39 = sphi 0, %s35
      %s59 = sphi 0, %s61
      %s62 = sphi 0, %s59
      %s63 = sphi 0, %s62
      %s79 = sphi 0, %s63
      %s91 = sphi 0, %s93
      %s94 = sphi 0, %s91
      %s95 = sphi 0, %s94
      %s111 = sphi 0, %s95
      %s121 = sphi 0, %s123
      %s124 = sphi 0, %s121
      %s125 = sphi 0, %s124
      %s141 = sphi 0, %s125
      %s147 = sphi 0, %s149
      %s150 = sphi 0, %s147
      %s151 = sphi 0, %s150
      %s167 = sphi 0, %s151
      %s173 = sphi 0, %s175
      %s176 = sphi 0, %s173
      %s177 = sphi 0, %s176
      %s193 = sphi 0, %s177
      %s203 = sphi 0, %s205
      %s206 = sphi 0, %s203
      %s207 = sphi 0, %s206
      %s223 = sphi 0, %s207
    $region4: #{tpu_custom_call.1} parent=1 // loop_header_branch
      %24 = sbr.rel (%p22) target = $region8
    $region5: #{tpu_custom_call.1} parent=1 // loop_body
      %s26 = ssub.s32 %s21, 1
      %s27 = ssub.s32 %s21, 2
      %s40 = sadd.s32 1, %s31
      %p41 = scmp.ge.s32.totalorder %s40, 1
      %s42 = scalar_select %p41, 0, %s40
      %s43 = sadd.s32 1, %s30
      %s44 = scalar_select %p41, %s43, %s30
      %p45 = scmp.ge.s32.totalorder %s44, 1
      %s46 = scalar_select %p45, 0, %s44
      %s47 = sadd.s32 1, %s29
      %s48 = scalar_select %p45, %s47, %s29
      %p49 = scmp.ge.s32.totalorder %s48, 2
      %s50 = scalar_select %p49, 0, %s48
      %s51 = sadd.s32 1, %s28
      %s52 = scalar_select %p49, %s51, %s28
      %p53 = scmp.ge.s32.totalorder %s52, 1
      %s54 = scalar_select %p53, 0, %s52
      %s55 = ssub.s32 %s29, %s50
      %s56 = ssub.s32 %s30, %s46
      %s57 = sor.u32 %s55, %s56
      %p58 = scmp.eq.s32.totalorder %s57, 0
      %s60 = sadd.s32 %s59, 1
      %s61 = scalar_select %p58, %s59, %s60
      %p64 = pneg %p58
      %p65 = scmp.eq.s32.totalorder %s21, 1
      %p66 = por %p64, %p65
      %p67 = scmp.ne.s32.totalorder %s59, %s62
      %p68 = scmp.eq.s32.totalorder %s21, 0
      %p69 = por %p67, %p68
      %p70 = scmp.ne.s32.totalorder %s59, %s62
      %p71 = scmp.eq.s32.totalorder %s26, 1
      %p72 = por %p70, %p71
      %p73 = scmp.ne.s32.totalorder %s62, %s63
      %p74 = scmp.eq.s32.totalorder %s26, 0
      %p75 = por %p73, %p74
      %p76 = scmp.ne.s32.totalorder %s62, %s63
      %p77 = scmp.eq.s32.totalorder %s27, 1
      %p78 = por %p76, %p77
      %p80 = scmp.ne.s32.totalorder %s63, %s79
      %p81 = scmp.eq.s32.totalorder %s27, 0
      %p82 = por %p80, %p81
      %p83 = scmp.eq.s32.totalorder %s30, 0
      %s84 = scalar_select %p83, %s31, 0
      %p85 = scmp.eq.s32.totalorder %s46, 0
      %s86 = scalar_select %p85, %s42, 0
      %s87 = ssub.s32 %s29, %s50
      %s88 = ssub.s32 %s84, %s86
      %s89 = sor.u32 %s87, %s88
      %p90 = scmp.eq.s32.totalorder %s89, 0
      %s92 = sadd.s32 %s91, 1
      %s93 = scalar_select %p90, %s91, %s92
      %p96 = pneg %p90
      %p97 = scmp.eq.s32.totalorder %s21, 1
      %p98 = por %p96, %p97
      %p99 = scmp.ne.s32.totalorder %s91, %s94
      %p100 = scmp.eq.s32.totalorder %s21, 0
      %p101 = por %p99, %p100
      %p102 = scmp.ne.s32.totalorder %s91, %s94
      %p103 = scmp.eq.s32.totalorder %s26, 1
      %p104 = por %p102, %p103
      %p105 = scmp.ne.s32.totalorder %s94, %s95
      %p106 = scmp.eq.s32.totalorder %s26, 0
      %p107 = por %p105, %p106
      %p108 = scmp.ne.s32.totalorder %s94, %s95
      %p109 = scmp.eq.s32.totalorder %s27, 1
      %p110 = por %p108, %p109
      %p112 = scmp.ne.s32.totalorder %s95, %s111
      %p113 = scmp.eq.s32.totalorder %s27, 0
      %p114 = por %p112, %p113
      %s115 = ssub.s32 %s29, %s50
      %s116 = ssub.s32 %s31, %s42
      %s117 = sor.u32 %s115, %s116
      %s118 = ssub.s32 %s28, %s54
      %s119 = sor.u32 %s117, %s118
      %p120 = scmp.eq.s32.totalorder %s119, 0
      %s122 = sadd.s32 %s121, 1
      %s123 = scalar_select %p120, %s121, %s122
      %p126 = pneg %p120
      %p127 = scmp.eq.s32.totalorder %s21, 1
      %p128 = por %p126, %p127
      %p129 = scmp.ne.s32.totalorder %s121, %s124
      %p130 = scmp.eq.s32.totalorder %s21, 0
      %p131 = por %p129, %p130
      %p132 = scmp.ne.s32.totalorder %s121, %s124
      %p133 = scmp.eq.s32.totalorder %s26, 1
      %p134 = por %p132, %p133
      %p135 = scmp.ne.s32.totalorder %s124, %s125
      %p136 = scmp.eq.s32.totalorder %s26, 0
      %p137 = por %p135, %p136
      %p138 = scmp.ne.s32.totalorder %s124, %s125
      %p139 = scmp.eq.s32.totalorder %s27, 1
      %p140 = por %p138, %p139
      %p142 = scmp.ne.s32.totalorder %s125, %s141
      %p143 = scmp.eq.s32.totalorder %s27, 0
      %p144 = por %p142, %p143
      %s145 = ssub.s32 %s28, %s54
      %p146 = scmp.eq.s32.totalorder %s145, 0
      %s148 = sadd.s32 %s147, 1
      %s149 = scalar_select %p146, %s147, %s148
      %p152 = pneg %p146
      %p153 = scmp.eq.s32.totalorder %s21, 1
      %p154 = por %p152, %p153
      %p155 = scmp.ne.s32.totalorder %s147, %s150
      %p156 = scmp.eq.s32.totalorder %s21, 0
      %p157 = por %p155, %p156
      %p158 = scmp.ne.s32.totalorder %s147, %s150
      %p159 = scmp.eq.s32.totalorder %s26, 1
      %p160 = por %p158, %p159
      %p161 = scmp.ne.s32.totalorder %s150, %s151
      %p162 = scmp.eq.s32.totalorder %s26, 0
      %p163 = por %p161, %p162
      %p164 = scmp.ne.s32.totalorder %s150, %s151
      %p165 = scmp.eq.s32.totalorder %s27, 1
      %p166 = por %p164, %p165
      %p168 = scmp.ne.s32.totalorder %s151, %s167
      %p169 = scmp.eq.s32.totalorder %s27, 0
      %p170 = por %p168, %p169
      %s171 = ssub.s32 %s28, %s54
      %p172 = scmp.eq.s32.totalorder %s171, 0
      %s174 = sadd.s32 %s173, 1
      %s175 = scalar_select %p172, %s173, %s174
      %p178 = pneg %p172
      %p179 = scmp.eq.s32.totalorder %s21, 1
      %p180 = por %p178, %p179
      %p181 = scmp.ne.s32.totalorder %s173, %s176
      %p182 = scmp.eq.s32.totalorder %s21, 0
      %p183 = por %p181, %p182
      %p184 = scmp.ne.s32.totalorder %s173, %s176
      %p185 = scmp.eq.s32.totalorder %s26, 1
      %p186 = por %p184, %p185
      %p187 = scmp.ne.s32.totalorder %s176, %s177
      %p188 = scmp.eq.s32.totalorder %s26, 0
      %p189 = por %p187, %p188
      %p190 = scmp.ne.s32.totalorder %s176, %s177
      %p191 = scmp.eq.s32.totalorder %s27, 1
      %p192 = por %p190, %p191
      %p194 = scmp.ne.s32.totalorder %s177, %s193
      %p195 = scmp.eq.s32.totalorder %s27, 0
      %p196 = por %p194, %p195
      %s197 = ssub.s32 %s29, %s50
      %s198 = ssub.s32 %s30, %s46
      %s199 = sor.u32 %s197, %s198
      %s200 = ssub.s32 %s28, %s54
      %s201 = sor.u32 %s199, %s200
      %p202 = scmp.eq.s32.totalorder %s201, 0
      %s204 = sadd.s32 %s203, 1
      %s205 = scalar_select %p202, %s203, %s204
      %p208 = pneg %p202
      %p209 = scmp.eq.s32.totalorder %s21, 1
      %p210 = por %p208, %p209
      %p211 = scmp.ne.s32.totalorder %s203, %s206
      %p212 = scmp.eq.s32.totalorder %s21, 0
      %p213 = por %p211, %p212
      %p214 = scmp.ne.s32.totalorder %s203, %s206
      %p215 = scmp.eq.s32.totalorder %s26, 1
      %p216 = por %p214, %p215
      %p217 = scmp.ne.s32.totalorder %s206, %s207
      %p218 = scmp.eq.s32.totalorder %s26, 0
      %p219 = por %p217, %p218
      %p220 = scmp.ne.s32.totalorder %s206, %s207
      %p221 = scmp.eq.s32.totalorder %s27, 1
      %p222 = por %p220, %p221
      %p224 = scmp.ne.s32.totalorder %s207, %s223
      %p225 = scmp.eq.s32.totalorder %s27, 0
      %p226 = por %p224, %p225
      %p227 = scmp.le.s32.totalorder 1, %s21
      %p228 = scmp.lt.s32.totalorder %s21, 3
      %p229 = pnand %p227, %p228
      %p230 = pneg %p229
      // Predicated region
      $region9: #{tpu_custom_call.1} parent=5 // pred_check
        _
      $region10: #{tpu_custom_call.1} parent=5 // pred_check_branch
        %232 = sbr.rel (%p229) target = $region12
      $region11: #{tpu_custom_call.1} parent=5 // pred_region
        %s233 = ssub.s32 %s21, 1
        // Predicated region
        $region13: #{tpu_custom_call.1} parent=11 // pred_check
          %p234 = pneg %p163
        $region14: #{tpu_custom_call.1} parent=11 // pred_check_branch
          %236 = sbr.rel (%p234) target = $region16
        $region15: #{tpu_custom_call.1} parent=11 // pred_region
          %238 = vsyncadd [#allocation14], 0
          %s239 = smul.addr %s32, 4
          %s240 = smul.addr %s239, 8
          %s241 = scalar_lea.hbm %s3, %s240
          %s242 = sshll.u32 %s241, 4
          %s243 = int_to_ptr.hbm [resolvable:$true] %s242
          %s244 = sshll.u32 [#allocation13], 4
          %s245 = int_to_ptr.vmem [resolvable:$true] %s244
          %250 = dma.hbm_to_vmem [thread:$0]  %s243, 512, %s245, [#allocation14], 128, 128, 8
        $region16: #{tpu_custom_call.1} parent=11 // pred_fallthru
          _
        // Predicated region
        $region17: #{tpu_custom_call.1} parent=11 // pred_check
          %p251 = pneg %p189
        $region18: #{tpu_custom_call.1} parent=11 // pred_check_branch
          %253 = sbr.rel (%p251) target = $region20
        $region19: #{tpu_custom_call.1} parent=11 // pred_region
          %255 = vsyncadd [#allocation14], 0
          %s256 = smul.addr %s32, 4
          %s257 = smul.addr %s256, 8
          %s258 = scalar_lea.hbm %s4, %s257
          %s259 = sshll.u32 %s258, 4
          %s260 = int_to_ptr.hbm [resolvable:$true] %s259
          %s261 = sshll.u32 [#allocation15], 4
          %s262 = int_to_ptr.vmem [resolvable:$true] %s261
          %267 = dma.hbm_to_vmem [thread:$0]  %s260, 512, %s262, [#allocation14], 128, 128, 8
        $region20: #{tpu_custom_call.1} parent=11 // pred_fallthru
          _
      $region12: #{tpu_custom_call.1} parent=5 // pred_fallthru
        _
      %p268 = scmp.lt.s32.totalorder %s21, 2
      // Predicated region
      $region21: #{tpu_custom_call.1} parent=5 // pred_check
        %p269 = pneg %p268
      $region22: #{tpu_custom_call.1} parent=5 // pred_check_branch
        %271 = sbr.rel (%p269) target = $region24
      $region23: #{tpu_custom_call.1} parent=5 // pred_region
        // Predicated region
        $region25: #{tpu_custom_call.1} parent=23 // pred_check
          %p272 = pneg %p69
        $region26: #{tpu_custom_call.1} parent=23 // pred_check_branch
          %274 = sbr.rel (%p272) target = $region28
        $region27: #{tpu_custom_call.1} parent=23 // pred_region
          %s275 = sand.u32 %s59, 1
          %s276 = scalar_lea.sflag [#allocation8], %s275
          %s277 = sand.u32 %s59, 1
          %s278 = smul.addr %s277, 8
          %s279 = scalar_lea.vmem [#allocation7], %s278
          %281 = vsyncadd %s276, 0
          %s282 = sadd.s32 %s30, %s29
          %s283 = smul.addr %s282, 8
          %s284 = scalar_lea.hbm %s0, %s283
          %s286 = sshll.u32 %s284, 4
          %s287 = int_to_ptr.hbm [resolvable:$true] %s286
          %s288 = sshll.u32 %s279, 4
          %s289 = int_to_ptr.vmem [resolvable:$true] %s288
          %291 = dma.hbm_to_vmem [thread:$0]  %s287, 128, %s289, %s276
        $region28: #{tpu_custom_call.1} parent=23 // pred_fallthru
          _
        // Predicated region
        $region29: #{tpu_custom_call.1} parent=23 // pred_check
          %p292 = pneg %p101
        $region30: #{tpu_custom_call.1} parent=23 // pred_check_branch
          %294 = sbr.rel (%p292) target = $region32
        $region31: #{tpu_custom_call.1} parent=23 // pred_region
          %s295 = sand.u32 %s21, 1
          %s296 = scalar_lea.sflag [#allocation11], %s295
          %s297 = sand.u32 %s91, 1
          %s298 = smul.addr %s297, 8
          %s299 = scalar_lea.vmem [#allocation10], %s298
          %p300 = scmp.eq.s32.totalorder %s30, 0
          %s301 = scalar_select %p300, %s31, 0
          %303 = vsyncadd %s296, 0
          %s304 = sadd.s32 %s301, %s29
          %s305 = smul.addr %s304, 8
          %s306 = scalar_lea.hbm %s1, %s305
          %s308 = sshll.u32 %s306, 4
          %s309 = int_to_ptr.hbm [resolvable:$true] %s308
          %s310 = sshll.u32 %s299, 4
          %s311 = int_to_ptr.vmem [resolvable:$true] %s310
          %313 = dma.hbm_to_vmem [thread:$0]  %s309, 128, %s311, %s296
        $region32: #{tpu_custom_call.1} parent=23 // pred_fallthru
          _
        // Predicated region
        $region33: #{tpu_custom_call.1} parent=23 // pred_check
          %p314 = pneg %p131
        $region34: #{tpu_custom_call.1} parent=23 // pred_check_branch
          %316 = sbr.rel (%p314) target = $region36
        $region35: #{tpu_custom_call.1} parent=23 // pred_region
          %s317 = sand.u32 %s21, 1
          %s318 = scalar_lea.sflag [#allocation11], %s317
          %s319 = sand.u32 %s121, 1
          %s320 = smul.addr %s319, 8
          %s321 = scalar_lea.vmem [#allocation12], %s320
          %323 = vsyncadd %s318, 0
          %s324 = sadd.s32 %s28, %s31
          %s325 = sadd.s32 %s324, %s29
          %s326 = smul.addr %s325, 8
          %s327 = scalar_lea.hbm %s2, %s326
          %s329 = sshll.u32 %s327, 4
          %s330 = int_to_ptr.hbm [resolvable:$true] %s329
          %s331 = sshll.u32 %s321, 4
          %s332 = int_to_ptr.vmem [resolvable:$true] %s331
          %334 = dma.hbm_to_vmem [thread:$0]  %s330, 128, %s332, %s318
        $region36: #{tpu_custom_call.1} parent=23 // pred_fallthru
          _
      $region24: #{tpu_custom_call.1} parent=5 // pred_fallthru
        _
      %p335 = scmp.le.s32.totalorder 1, %s21
      %p336 = scmp.lt.s32.totalorder %s21, 3
      %p337 = pnand %p335, %p336
      %p338 = pneg %p337
      // Predicated region
      $region37: #{tpu_custom_call.1} parent=5 // pred_check
        _
      $region38: #{tpu_custom_call.1} parent=5 // pred_check_branch
        %340 = sbr.rel (%p337) target = $region40
      $region39: #{tpu_custom_call.1} parent=5 // pred_region
        %s341 = ssub.s32 %s21, 1
        %s342 = sand.u32 %s62, 1
        %s343 = scalar_lea.sflag [#allocation8], %s342
        %s344 = sand.u32 %s62, 1
        %s345 = smul.addr %s344, 8
        %s346 = scalar_lea.vmem [#allocation7], %s345
        // Predicated region
        $region41: #{tpu_custom_call.1} parent=39 // pred_check
          %p347 = pneg %p75
        $region42: #{tpu_custom_call.1} parent=39 // pred_check_branch
          %349 = sbr.rel (%p347) target = $region44
        $region43: #{tpu_custom_call.1} parent=39 // pred_region
          %351 = dma.done %s343, 128
        $region44: #{tpu_custom_call.1} parent=39 // pred_fallthru
          _
        %s352 = sand.u32 %s26, 1
        %s353 = scalar_lea.sflag [#allocation11], %s352
        %s354 = sand.u32 %s94, 1
        %s355 = smul.addr %s354, 8
        %s356 = scalar_lea.vmem [#allocation10], %s355
        // Predicated region
        $region45: #{tpu_custom_call.1} parent=39 // pred_check
          %p357 = pneg %p107
        $region46: #{tpu_custom_call.1} parent=39 // pred_check_branch
          %359 = sbr.rel (%p357) target = $region48
        $region47: #{tpu_custom_call.1} parent=39 // pred_region
          %361 = dma.done %s353, 128
        $region48: #{tpu_custom_call.1} parent=39 // pred_fallthru
          _
        %s362 = sand.u32 %s26, 1
        %s363 = scalar_lea.sflag [#allocation11], %s362
        %s364 = sand.u32 %s124, 1
        %s365 = smul.addr %s364, 8
        %s366 = scalar_lea.vmem [#allocation12], %s365
        // Predicated region
        $region49: #{tpu_custom_call.1} parent=39 // pred_check
          %p367 = pneg %p137
        $region50: #{tpu_custom_call.1} parent=39 // pred_check_branch
          %369 = sbr.rel (%p367) target = $region52
        $region51: #{tpu_custom_call.1} parent=39 // pred_region
          %371 = dma.done %s363, 128
        $region52: #{tpu_custom_call.1} parent=39 // pred_fallthru
          _
        // Predicated region
        $region53: #{tpu_custom_call.1} parent=39 // pred_check
          %p372 = pneg %p163
        $region54: #{tpu_custom_call.1} parent=39 // pred_check_branch
          %374 = sbr.rel (%p372) target = $region56
        $region55: #{tpu_custom_call.1} parent=39 // pred_region
          %376 = dma.done [#allocation14], 512
        $region56: #{tpu_custom_call.1} parent=39 // pred_fallthru
          _
        // Predicated region
        $region57: #{tpu_custom_call.1} parent=39 // pred_check
          %p377 = pneg %p189
        $region58: #{tpu_custom_call.1} parent=39 // pred_check_branch
          %379 = sbr.rel (%p377) target = $region60
        $region59: #{tpu_custom_call.1} parent=39 // pred_region
          %381 = dma.done [#allocation14], 512
        $region60: #{tpu_custom_call.1} parent=39 // pred_fallthru
          _
        %s382 = sand.u32 %s62, 1
        %s383 = scalar_lea.sflag [#allocation8], %s382
        %s384 = sand.u32 %s62, 1
        %s385 = smul.addr %s384, 8
        %s386 = scalar_lea.vmem [#allocation7], %s385
        %p387 = pneg %p75
        %p388 = pneg %p72
        %s389 = sand.u32 %s26, 1
        %s390 = scalar_lea.sflag [#allocation11], %s389
        %s391 = sand.u32 %s94, 1
        %s392 = smul.addr %s391, 8
        %s393 = scalar_lea.vmem [#allocation10], %s392
        %p394 = pneg %p107
        %p395 = pneg %p104
        %s396 = sand.u32 %s26, 1
        %s397 = scalar_lea.sflag [#allocation11], %s396
        %s398 = sand.u32 %s124, 1
        %s399 = smul.addr %s398, 8
        %s400 = scalar_lea.vmem [#allocation12], %s399
        %p401 = pneg %p137
        %p402 = pneg %p134
        %p403 = pneg %p163
        %p404 = pneg %p160
        %p405 = pneg %p189
        %p406 = pneg %p186
        %p407 = pneg %p219
        %p408 = pneg %p216
        %s409 = sand.u32 %s206, 1
        %s410 = scalar_lea.sflag [#allocation9], %s409
        %s411 = sand.u32 %s206, 1
        %s412 = smul.addr %s411, 8
        %s413 = scalar_lea.vmem [#allocation16], %s412
        %p414 = scmp.eq.s32.totalorder %s34, 0
        %s415 = scalar_select %p414, %s35, 0
        %p416 = scmp.eq.s32.totalorder %s34, 0
        // Predicated region
        $region61: #{tpu_custom_call.1} parent=39 // pred_check
          %p417 = pneg %p416
        $region62: #{tpu_custom_call.1} parent=39 // pred_check_branch
          %419 = sbr.rel (%p417) target = $region64
        $region63: #{tpu_custom_call.1} parent=39 // pred_region
          %v420 = vld [vmem:[%s356] sm:$0xff]
          %v421 = vld [vmem:[#allocation15] sm:$0xff]
          %v422 = vld [vmem:[#allocation15 + $0x8] sm:$0xff]
          %v423 = vld [vmem:[#allocation15 + $0x10] sm:$0xff]
          %v424 = vld [vmem:[#allocation15 + $0x18] sm:$0xff]
          %vm425 = vcmask 261120
          %v427 = vsel %vm425, %v420, 0
          %v430 = vsel %vm425, %v421, 0
          %v433 = vsel %vm425, %v422, 0
          %v436 = vsel %vm425, %v423, 0
          %v439 = vsel %vm425, %v424, 0
          %441 = vmatpush.xpose.msra.mxu0 0.0
          %442 = vmatpush.xpose.msra.mxu0 0.0
          %443 = vmatpush.xpose.msra.mxu0 0.0
          %444 = vmatpush.xpose.msra.mxu0 0.0
          %445 = vmatpush.xpose.msra.mxu0 0.0
          %446 = vmatpush.xpose.msra.mxu0 0.0
          %447 = vmatpush.xpose.msra.mxu0 0.0
          %448 = vmatpush.xpose.msra.mxu0 0.0
          %449 = vmatpush.xpose.msra.mxu0 0.0
          %450 = vmatpush.xpose.msra.mxu0 0.0
          %451 = vmatpush.xpose.msra.mxu0 0.0
          %452 = vmatpush.xpose.msra.mxu0 0.0
          %453 = vmatpush.xpose.msra.mxu0 %v439
          %454 = vmatpush.xpose.msra.mxu0 %v436
          %455 = vmatpush.xpose.msra.mxu0 %v433
          %456 = vmatpush.xpose.msra.mxu0 %v430
          %457 = vmatmul.f32.gmra.mxu0 %v427
          %v458 = vpop.f32.mrf.mxu0
          %v459 = vadd.f32 0.0, %v458
          %460 = vdwg.mxu0
          %s461 = smul.u32 %s35, 8
          %s462 = scalar_lea.vmem [#allocation3], %s461
          %463 = vst.msk [vmem:[%s462] sm:$0xff] %vm425, %v459
        $region64: #{tpu_custom_call.1} parent=39 // pred_fallthru
          _
        %p464 = scmp.eq.s32.totalorder %s35, 0
        // Predicated region
        $region65: #{tpu_custom_call.1} parent=39 // pred_check
          %p465 = pneg %p464
        $region66: #{tpu_custom_call.1} parent=39 // pred_check_branch
          %467 = sbr.rel (%p465) target = $region68
        $region67: #{tpu_custom_call.1} parent=39 // pred_region
          %v468 = vld [vmem:[%s346] sm:$0xff]
          %v469 = vld [vmem:[#allocation13] sm:$0xff]
          %v470 = vld [vmem:[#allocation13 + $0x8] sm:$0xff]
          %v471 = vld [vmem:[#allocation13 + $0x10] sm:$0xff]
          %v472 = vld [vmem:[#allocation13 + $0x18] sm:$0xff]
          %vm473 = vcmask 261120
          %v475 = vsel %vm473, %v468, 0
          %v478 = vsel %vm473, %v469, 0
          %v481 = vsel %vm473, %v470, 0
          %v484 = vsel %vm473, %v471, 0
          %v487 = vsel %vm473, %v472, 0
          %489 = vmatpush.xpose.msra.mxu0 0.0
          %490 = vmatpush.xpose.msra.mxu0 0.0
          %491 = vmatpush.xpose.msra.mxu0 0.0
          %492 = vmatpush.xpose.msra.mxu0 0.0
          %493 = vmatpush.xpose.msra.mxu0 0.0
          %494 = vmatpush.xpose.msra.mxu0 0.0
          %495 = vmatpush.xpose.msra.mxu0 0.0
          %496 = vmatpush.xpose.msra.mxu0 0.0
          %497 = vmatpush.xpose.msra.mxu0 0.0
          %498 = vmatpush.xpose.msra.mxu0 0.0
          %499 = vmatpush.xpose.msra.mxu0 0.0
          %500 = vmatpush.xpose.msra.mxu0 0.0
          %501 = vmatpush.xpose.msra.mxu0 %v487
          %502 = vmatpush.xpose.msra.mxu0 %v484
          %503 = vmatpush.xpose.msra.mxu0 %v481
          %504 = vmatpush.xpose.msra.mxu0 %v478
          %505 = vmatmul.f32.gmra.mxu0 %v475
          %v506 = vpop.f32.mrf.mxu0
          %v507 = vadd.f32 0.0, %v506
          %508 = vdwg.mxu0
          %509 = vst.msk [vmem:[#allocation2] sm:$0xff] %vm473, %v507
          %vm510 = vcmask 15360
          %511 = vst.msk [vmem:[#allocation4] sm:$0xff] %vm510, -inf
          %512 = vst.msk [vmem:[#allocation5] sm:$0xff] %vm510, 0.0
          %513 = vst.msk [vmem:[#allocation6] sm:$0xff] %vm473, 0.0
        $region68: #{tpu_custom_call.1} parent=39 // pred_fallthru
          _
        %v514 = vld [vmem:[#allocation2] sm:$0xff]
        %s515 = smul.u32 %s35, 8
        %s516 = scalar_lea.vmem [#allocation3], %s515
        %v517 = vld [vmem:[%s516] sm:$0xff]
        %v518 = vld [vmem:[%s366] sm:$0xff]
        %vm519 = vcmask 130048
        %v521 = vsel %vm519, %v514, 0
        %v524 = vsel %vm519, %v517, 0
        %526 = vmatpush.xpose.msra.mxu0 0.0
        %527 = vmatpush.xpose.msra.mxu0 0.0
        %528 = vmatpush.xpose.msra.mxu0 0.0
        %529 = vmatpush.xpose.msra.mxu0 0.0
        %530 = vmatpush.xpose.msra.mxu0 0.0
        %531 = vmatpush.xpose.msra.mxu0 0.0
        %532 = vmatpush.xpose.msra.mxu0 0.0
        %533 = vmatpush.xpose.msra.mxu0 0.0
        %534 = vmatpush.xpose.msra.mxu0 0.0
        %535 = vmatpush.xpose.msra.mxu0 0.0
        %536 = vmatpush.xpose.msra.mxu0 0.0
        %537 = vmatpush.xpose.msra.mxu0 0.0
        %538 = vmatpush.xpose.msra.mxu0 0.0
        %539 = vmatpush.xpose.msra.mxu0 0.0
        %540 = vmatpush.xpose.msra.mxu0 0.0
        %541 = vmatpush.xpose.msra.mxu0 %v524
        %542 = vmatmul.f32.gmra.mxu0 %v521
        %v543 = vpop.f32.mrf.mxu0
        %v544 = vadd.f32 0.0, %v543
        %545 = vdwg.mxu0
        %v546 = vld [vmem:[#allocation4] sm:$0xff]
        %vm547 = vcmask 64512
        %v548 = vsel %vm547, %v544, -inf
        %549 = vmax.xlane.f32.xlu0 %v548
        %v550 = vpop.xlane.xlu0 %549
        %v551 = vmax.f32 %v546, %v550
        %v552 = vsub.f32 %v546, %v551
        %v553 = vmul.f32 %v552, 1.442695
        %v554 = vpow.pop %v553
        %556 = vset.pattern.permute.xlu0 0
        %557 = vperm.xlu0 %556, %v551
        %v558 = vpop.permute.xlu0 %557
        %v560 = vsub.f32 %v544, %v558
        %v561 = vmul.f32 %v560, 1.442695
        %v562 = vpow.pop %v561
        %v563 = vld [vmem:[#allocation5] sm:$0xff]
        %v564 = vmul.f32 %v554, %v563
        %v565 = vsel %vm547, %v562, 0.0
        %566 = vadd.xlane.f32.xlu0 %v565
        %v567 = vpop.xlane.xlu0 %566
        %v568 = vadd.f32 %v564, %v567
        %vm569 = vcmask 7168
        %570 = vst.msk [vmem:[#allocation5] sm:$0xff] %vm569, %v568
        %v571 = vld [vmem:[#allocation6] sm:$0xff]
        %573 = vset.pattern.permute.xlu0 0
        %574 = vperm.xlu0 %573, %v554
        %v575 = vpop.permute.xlu0 %574
        %v577 = vmul.f32 %v575, %v571
        %v579 = vsel %vm547, %v562, 0
        %581 = vmatpush.msra.mxu0 0.0
        %582 = vmatpush.msra.mxu0 0.0
        %583 = vmatpush.msra.mxu0 0.0
        %584 = vmatpush.msra.mxu0 0.0
        %585 = vmatpush.msra.mxu0 0.0
        %586 = vmatpush.msra.mxu0 0.0
        %587 = vmatpush.msra.mxu0 0.0
        %588 = vmatpush.msra.mxu0 0.0
        %589 = vmatpush.msra.mxu0 0.0
        %590 = vmatpush.msra.mxu0 0.0
        %591 = vmatpush.msra.mxu0 0.0
        %592 = vmatpush.msra.mxu0 0.0
        %593 = vmatpush.msra.mxu0 0.0
        %594 = vmatpush.msra.mxu0 0.0
        %595 = vmatpush.msra.mxu0 0.0
        %596 = vmatpush.msra.mxu0 %v518
        %597 = vmatmul.f32.gmra.mxu0 %v579
        %v598 = vpop.f32.mrf.mxu0
        %v599 = vadd.f32 0.0, %v598
        %600 = vdwg.mxu0
        %v601 = vadd.f32 %v577, %v599
        %602 = vst.msk [vmem:[#allocation6] sm:$0xff] %vm519, %v601
        %603 = vst.msk [vmem:[#allocation4] sm:$0xff] %vm569, %v551
        %604 = vrot.lane.b32.xlu0 %v514, 112
        %v605 = vpop.permute.xlu0 %604
        %606 = vrot.lane.b32.xlu0 %v517, 112
        %v607 = vpop.permute.xlu0 %606
        %v608 = vsel %vm519, %v605, 0
        %v610 = vsel %vm519, %v607, 0
        %612 = vmatpush.xpose.msra.mxu0 0.0
        %613 = vmatpush.xpose.msra.mxu0 0.0
        %614 = vmatpush.xpose.msra.mxu0 0.0
        %615 = vmatpush.xpose.msra.mxu0 0.0
        %616 = vmatpush.xpose.msra.mxu0 0.0
        %617 = vmatpush.xpose.msra.mxu0 0.0
        %618 = vmatpush.xpose.msra.mxu0 0.0
        %619 = vmatpush.xpose.msra.mxu0 0.0
        %620 = vmatpush.xpose.msra.mxu0 0.0
        %621 = vmatpush.xpose.msra.mxu0 0.0
        %622 = vmatpush.xpose.msra.mxu0 0.0
        %623 = vmatpush.xpose.msra.mxu0 0.0
        %624 = vmatpush.xpose.msra.mxu0 0.0
        %625 = vmatpush.xpose.msra.mxu0 0.0
        %626 = vmatpush.xpose.msra.mxu0 0.0
        %627 = vmatpush.xpose.msra.mxu0 %v610
        %628 = vmatmul.f32.gmra.mxu0 %v608
        %v629 = vpop.f32.mrf.mxu0
        %v630 = vadd.f32 0.0, %v629
        %631 = vdwg.mxu0
        %v632 = vld [vmem:[#allocation4] sm:$0xff]
        %v633 = vsel %vm547, %v630, -inf
        %634 = vmax.xlane.f32.xlu0 %v633
        %v635 = vpop.xlane.xlu0 %634
        %v636 = vmax.f32 %v632, %v635
        %v637 = vsub.f32 %v632, %v636
        %v638 = vmul.f32 %v637, 1.442695
        %v639 = vpow.pop %v638
        %641 = vset.pattern.permute.xlu0 1
        %642 = vperm.xlu0 %641, %v636
        %v643 = vpop.permute.xlu0 %642
        %v645 = vsub.f32 %v630, %v643
        %v646 = vmul.f32 %v645, 1.442695
        %v647 = vpow.pop %v646
        %v648 = vld [vmem:[#allocation5] sm:$0xff]
        %v649 = vmul.f32 %v639, %v648
        %v650 = vsel %vm547, %v647, 0.0
        %651 = vadd.xlane.f32.xlu0 %v650
        %v652 = vpop.xlane.xlu0 %651
        %v653 = vadd.f32 %v649, %v652
        %vm654 = vcmask 15368
        %655 = vst.msk [vmem:[#allocation5] sm:$0xff] %vm654, %v653
        %v656 = vld [vmem:[#allocation6] sm:$0xff]
        %658 = vset.pattern.permute.xlu0 1
        %659 = vperm.xlu0 %658, %v639
        %v660 = vpop.permute.xlu0 %659
        %v662 = vmul.f32 %v660, %v656
        %664 = vrot.lane.b32.xlu0 %v518, 112
        %v665 = vpop.permute.xlu0 %664
        %v668 = vsel %vm547, %v647, 0
        %670 = vmatpush.msra.mxu0 0.0
        %671 = vmatpush.msra.mxu0 0.0
        %672 = vmatpush.msra.mxu0 0.0
        %673 = vmatpush.msra.mxu0 0.0
        %674 = vmatpush.msra.mxu0 0.0
        %675 = vmatpush.msra.mxu0 0.0
        %676 = vmatpush.msra.mxu0 0.0
        %677 = vmatpush.msra.mxu0 0.0
        %678 = vmatpush.msra.mxu0 0.0
        %679 = vmatpush.msra.mxu0 0.0
        %680 = vmatpush.msra.mxu0 0.0
        %681 = vmatpush.msra.mxu0 0.0
        %682 = vmatpush.msra.mxu0 0.0
        %683 = vmatpush.msra.mxu0 0.0
        %684 = vmatpush.msra.mxu0 0.0
        %685 = vmatpush.msra.mxu0 %v665
        %686 = vmatmul.f32.gmra.mxu0 %v668
        %v687 = vpop.f32.mrf.mxu0
        %v688 = vadd.f32 0.0, %v687
        %689 = vdwg.mxu0
        %691 = vrot.lane.b32.xlu0 %v688, 16
        %v692 = vpop.permute.xlu0 %691
        %v694 = vadd.f32 %v662, %v692
        %vm695 = vcmask 261248
        %696 = vst.msk [vmem:[#allocation6] sm:$0xff] %vm695, %v694
        %697 = vst.msk [vmem:[#allocation4] sm:$0xff] %vm654, %v636
        // Predicated region
        $region69: #{tpu_custom_call.1} parent=39 // pred_check
          %p698 = pneg %p464
        $region70: #{tpu_custom_call.1} parent=39 // pred_check_branch
          %700 = sbr.rel (%p698) target = $region72
        $region71: #{tpu_custom_call.1} parent=39 // pred_region
          %v701 = vld [vmem:[#allocation5] sm:$0xff]
          %v702 = vrcp.pop %v701
          %v703 = vld [vmem:[#allocation6] sm:$0xff]
          %705 = vset.pattern.permute.xlu0 0
          %706 = vperm.xlu0 %705, %v702
          %v707 = vpop.permute.xlu0 %706
          %v709 = vmul.f32 %v703, %v707
          %710 = vset.pattern.permute.xlu0 1
          %711 = vperm.xlu0 %710, %v702
          %v712 = vpop.permute.xlu0 %711
          %v714 = vmul.f32 %v703, %v712
          %v715 = vsel %vm519, %v709, %v714
          %v716 = vtanh.pop %v715
          %vm717 = vcmask 261120
          %718 = vst.msk [vmem:[%s413] sm:$0xff] %vm717, %v716
        $region72: #{tpu_custom_call.1} parent=39 // pred_fallthru
          _
        %s719 = sand.u32 %s206, 1
        %s720 = scalar_lea.sflag [#allocation9], %s719
        %s721 = sand.u32 %s206, 1
        %s722 = smul.addr %s721, 8
        %s723 = scalar_lea.vmem [#allocation16], %s722
        // Predicated region
        $region73: #{tpu_custom_call.1} parent=39 // pred_check
          %p724 = pneg %p216
        $region74: #{tpu_custom_call.1} parent=39 // pred_check_branch
          %726 = sbr.rel (%p724) target = $region76
        $region75: #{tpu_custom_call.1} parent=39 // pred_region
          %728 = vsyncadd %s720, 0
          %s729 = sadd.s32 %s32, %s34
          %s730 = sadd.s32 %s729, %s33
          %s731 = smul.addr %s730, 8
          %s732 = scalar_lea.hbm %s5, %s731
          %s734 = sshll.u32 %s723, 4
          %s735 = int_to_ptr.vmem [resolvable:$true] %s734
          %s736 = sshll.u32 %s732, 4
          %s737 = int_to_ptr.hbm [resolvable:$true] %s736
          %739 = dma.vmem_to_hbm [thread:$0]  %s735, 128, %s737, %s720
        $region76: #{tpu_custom_call.1} parent=39 // pred_fallthru
          _
      $region40: #{tpu_custom_call.1} parent=5 // pred_fallthru
        _
      %p740 = scmp.le.s32.totalorder 2, %s21
      // Predicated region
      $region77: #{tpu_custom_call.1} parent=5 // pred_check
        %p741 = pneg %p740
      $region78: #{tpu_custom_call.1} parent=5 // pred_check_branch
        %743 = sbr.rel (%p741) target = $region80
      $region79: #{tpu_custom_call.1} parent=5 // pred_region
        %s744 = ssub.s32 %s21, 2
        // Predicated region
        $region81: #{tpu_custom_call.1} parent=79 // pred_check
          %p745 = pneg %p222
        $region82: #{tpu_custom_call.1} parent=79 // pred_check_branch
          %747 = sbr.rel (%p745) target = $region84
        $region83: #{tpu_custom_call.1} parent=79 // pred_region
          %s748 = sand.u32 %s207, 1
          %s749 = scalar_lea.sflag [#allocation9], %s748
          %s750 = sand.u32 %s207, 1
          %s751 = smul.addr %s750, 8
          %s752 = scalar_lea.vmem [#allocation16], %s751
          %754 = dma.done %s749, 128
        $region84: #{tpu_custom_call.1} parent=79 // pred_fallthru
          _
      $region80: #{tpu_custom_call.1} parent=5 // pred_fallthru
        _
    $region6: #{tpu_custom_call.1} parent=1 // loop_footer
      %s25 = sadd.s32 1, %s21
    $region7: #{tpu_custom_call.1} parent=1 // loop_footer_branch
      %20 = sbr.rel target = $region3
    $region8: #{tpu_custom_call.1} parent=1 // loop_exit
      _
    %755 = vsyncpa [#allocation8], 1
    %s756 = scalar_lea.sflag [#allocation8], 1
    %757 = vsyncpa %s756, 1
    %758 = vsyncpa [#allocation11], 1
    %s759 = scalar_lea.sflag [#allocation11], 1
    %760 = vsyncpa %s759, 1
    %761 = vsyncpa [#allocation14], 1
    %762 = vsyncpa [#allocation9], 1
    %s763 = scalar_lea.sflag [#allocation9], 1
    %764 = vsyncpa %s763, 1

</llo_original>
